<compile_context>
chip_gen: v5e
topology: v5e:2x2
jax: 0.10.0
libtpu: 0.0.40
codegen_flags: <defaults>
</compile_context>

<pallas_src>
import jax
import jax.numpy as jnp
from jax.experimental import pallas as pl
from jax.experimental.pallas import tpu as pltpu


def _round_up(x, m):
    return (x + m - 1) // m * m


def _vida_kernel(x_ref, w_ref, wd_ref, wu_ref, o_ref, t_ref):
    """o = x @ W + (x @ Wd_fused) @ Wu_fused   (scale already folded into Wu_fused).

    t_ref is a per-M-tile VMEM cache of the down-projection; it is filled only
    on the first N-tile (j == 0) and reused for all other N-tiles of that row.
    """
    x = x_ref[...]

    @pl.when(pl.program_id(1) == 0)
    def _():
        t_ref[...] = jnp.dot(x, wd_ref[...], preferred_element_type=jnp.float32)

    base = jnp.dot(x, w_ref[...], preferred_element_type=jnp.float32)
    # NOTE: the low-rank intermediate is cast back to the activation dtype
    # before the up-projection (matches common bf16 LoRA practice; slight
    # precision divergence from a full-f32 chain when x is bf16).
    lo = jnp.dot(t_ref[...].astype(x.dtype), wu_ref[...],
                 preferred_element_type=jnp.float32)
    o_ref[...] = (base + lo).astype(o_ref.dtype)


def prepare_vida_params(w, wd, wu, wd2, wu2, *, scale=1.0, lane=128, n_align=256):
    """One-time parameter preparation (call once at module init, NOT per forward).

    Inputs are PyTorch-layout weights ([out, in] style):
      w   : [out, in]     linearVida.weight
      wd  : [r,   in]     Vida_down.weight      wu  : [out, r]   Vida_up.weight
      wd2 : [r2,  in]     Vida_down2.weight     wu2 : [out, r2]  Vida_up2.weight
    """
    w = jnp.asarray(w)
    wd, wu, wd2, wu2 = map(jnp.asarray, (wd, wu, wd2, wu2))
    out_features, in_features = w.shape
    r, r2 = wd.shape[0], wd2.shape[0]
    r_tot = r + r2
    r_pad = _round_up(max(r_tot, lane), lane)

    # Lane-dense output padding.  For layers wider than one lane-group, align
    # further to n_align so tile_n = 256/512 divides n_pad (no 128 fallback).
    n_pad = _round_up(max(out_features, lane), lane)
    if out_features > lane:
        n_pad = _round_up(n_pad, max(lane, n_align))

    w_t = w.T                                                  # [in, out]
    wd_f = jnp.concatenate([wd.T, wd2.T], axis=1)              # [in, r+r2]
    wu_f = jnp.concatenate([wu.T, wu2.T], axis=0)              # [r+r2, out]
    wu_f = wu_f * jnp.asarray(scale, wu_f.dtype)               # fold scale once

    if r_pad != r_tot:                                         # lane-dense rank
        wd_f = jnp.pad(wd_f, ((0, 0), (0, r_pad - r_tot)))
        wu_f = jnp.pad(wu_f, ((0, r_pad - r_tot), (0, 0)))
    if n_pad != out_features:                                  # lane-dense output
        w_t = jnp.pad(w_t, ((0, 0), (0, n_pad - out_features)))
        wu_f = jnp.pad(wu_f, ((0, 0), (0, n_pad - out_features)))

    return {
        "w_t": w_t, "wd_f": wd_f, "wu_f": wu_f,
        "in_features": in_features, "out_features": out_features,
        "n_pad": n_pad, "r_pad": r_pad,
    }


def _pick_tile_n(n_pad, want):
    """Largest multiple of 128 that divides n_pad and is <= want."""
    want = max(128, min(want, n_pad))
    best, t = 128, 128
    while t <= want:
        if n_pad % t == 0:
            best = t
        t += 128
    return best


def _footprint_bytes(tile_m, tile_n, k, r_pad, dsz):
    """Estimated VMEM footprint for one pipeline stage set."""
    dbuf = 2 * dsz * (tile_m * k + k * tile_n + k * r_pad
                      + r_pad * tile_n + tile_m * tile_n)   # double-buffered I/O
    scratch = 4 * tile_m * r_pad                             # f32 t-cache
    interm = 4 * tile_m * (tile_n + r_pad)                   # in-flight f32 results
    return dbuf + scratch + interm


def vida_injected_linear(x, params, *, tile_m=512, tile_n=512):
    """x: [..., in_features] -> [..., out_features]."""
    in_features = params["in_features"]
    out_features = params["out_features"]
    n_pad = params["n_pad"]
    r_pad = params["r_pad"]
    w_t, wd_f, wu_f = params["w_t"], params["wd_f"], params["wu_f"]

    lead_shape = x.shape[:-1]
    x2d = x.reshape(-1, in_features)
    m = x2d.shape[0]
    dsz = jnp.dtype(x2d.dtype).itemsize

    # --- per-generation VMEM budget (≈46 MiB v7x, ≈92 MiB v5e/v6e) -----------
    try:
        vmem_cap = int(getattr(pltpu.get_tpu_info(), "vmem_capacity_bytes",
                               64 * 2**20))
    except Exception:
        vmem_cap = 64 * 2**20                       # conservative fallback
    budget = int(0.72 * vmem_cap)                   # headroom for compiler scratch

    # --- tile selection -------------------------------------------------------
    tile_m = min(tile_m, _round_up(m, 16))          # sublane-aligned, <= problem
    tile_n = _pick_tile_n(n_pad, tile_n)            # wide N first (weight-stream eff.)
    while _footprint_bytes(tile_m, tile_n, in_features, r_pad, dsz) > budget:
        if tile_m > 64:
            tile_m = max(64, tile_m // 2)
        elif tile_n > 128:
            tile_n = _pick_tile_n(n_pad, tile_n // 2)
        else:
            break  # TODO(synk): K-axis tiling needed for extremely large in_features
    footprint = _footprint_bytes(tile_m, tile_n, in_features, r_pad, dsz)
    vmem_limit = int(min(budget, max(int(1.5 * footprint), 8 * 2**20)))

    m_tiles = -(-m // tile_m)                       # ragged last block handled by Pallas
    n_tiles = n_pad // tile_n
    grid = (m_tiles, n_tiles)
    m_full = m_tiles * tile_m

    # Executed-work cost estimate (down-proj once per M-tile; W/Wu re-streamed
    # once per M-tile; x fetched once per M-tile since its block index is
    # constant across j).
    cost = pl.CostEstimate(
        flops=(2 * m_full * in_features * n_pad          # base matmul
               + 2 * m_full * in_features * r_pad        # down-projection
               + 2 * m_full * r_pad * n_pad),            # up-projection
        transcendentals=0,
        bytes_accessed=dsz * (
            m_full * in_features
            + m_tiles * in_features * n_pad
            + in_features * r_pad
            + m_tiles * r_pad * n_pad
            + m * n_pad
        ),
    )

    out = pl.pallas_call(
        _vida_kernel,
        out_shape=jax.ShapeDtypeStruct((m, n_pad), x.dtype),
        grid_spec=pltpu.PrefetchScalarGridSpec(
            num_scalar_prefetch=0,
            grid=grid,
            in_specs=[
                pl.BlockSpec((tile_m, in_features), lambda i, j: (i, 0)),
                pl.BlockSpec((in_features, tile_n), lambda i, j: (0, j)),
                # TODO(synk): pipeline_mode=pl.Buffered(1) for this constant
                # (0, 0) block to save one K x r_pad VMEM buffer once verified.
                pl.BlockSpec((in_features, r_pad), lambda i, j: (0, 0)),
                pl.BlockSpec((r_pad, tile_n), lambda i, j: (0, j)),
            ],
            out_specs=pl.BlockSpec((tile_m, tile_n), lambda i, j: (i, j)),
            scratch_shapes=[pltpu.VMEM((tile_m, r_pad), jnp.float32)],
        ),
        compiler_params=pltpu.CompilerParams(
            # i "parallel" (megacore sharding); j "arbitrary" so each core
            # visits j == 0 first for every M-tile (t-cache validity).
            dimension_semantics=("parallel", "arbitrary"),
            vmem_limit_bytes=vmem_limit,
        ),
        cost_estimate=cost,
    )(x2d, w_t, wd_f, wu_f)

    out = out[:, :out_features]
    return out.reshape(*lead_shape, out_features)


if __name__ == "__main__":
    # Small, forward-implied shapes: token-style input (batch, seq, in_features).
    batch, seq = 2, 8
    in_features, out_features = 32, 32
    r, r2 = 4, 64
    scale = 1.0

    key = jax.random.PRNGKey(0)
    kx, kw, kd, kd2 = jax.random.split(key, 4)

    x = jax.random.normal(kx, (batch, seq, in_features), dtype=jnp.float32)

    # Deterministic synthetic parameters (PyTorch layout: [out, in]).
    w = jax.random.normal(kw, (out_features, in_features), dtype=jnp.float32) * 0.1
    wd = jax.random.normal(kd, (r, in_features), dtype=jnp.float32) * (1.0 / r**2)
    wd2 = jax.random.normal(kd2, (r2, in_features), dtype=jnp.float32) * (1.0 / r**2)
    # Vida_up / Vida_up2 are zero-initialized in the module; use small nonzero
    # values so the low-rank path is actually exercised numerically.
    wu = jnp.full((out_features, r), 0.01, dtype=jnp.float32)
    wu2 = jnp.full((out_features, r2), 0.01, dtype=jnp.float32)

    # One-time parameter prep (transpose / fuse / fold scale / pad).
    params = prepare_vida_params(w, wd, wu, wd2, wu2, scale=scale)

    out = vida_injected_linear(x, params)
    out = jax.block_until_ready(out)

    # Pure-JAX reference (same semantics as the PyTorch forward).
    ref = (
        x @ w.T
        + ((x @ wd.T) @ wu.T) * scale
        + ((x @ wd2.T) @ wu2.T) * scale
    )
    assert out.shape == (batch, seq, out_features)
    assert jnp.allclose(out, ref, atol=1e-5, rtol=1e-5)

    print("KERNEL_OK")
</pallas_src>

<mosaic_0001>
module attributes {stable_mosaic.version = 11 : i64} {
  func.func @_vida_kernel(%arg0: i32, %arg1: i32, %arg2: memref<16x32xf32, #tpu.memory_space<vmem>>, %arg3: memref<32x128xf32, #tpu.memory_space<vmem>>, %arg4: memref<32x128xf32, #tpu.memory_space<vmem>>, %arg5: memref<128x128xf32, #tpu.memory_space<vmem>>, %arg6: memref<16x128xf32, #tpu.memory_space<vmem>>, %arg7: memref<16x128xf32, #tpu.memory_space<vmem>>) attributes {dimension_semantics = [#tpu.dimension_semantics<parallel>, #tpu.dimension_semantics<arbitrary>], iteration_bounds = array<i64: 1, 1>, scalar_prefetch = 0 : i64, scratch_operands = 1 : i64, tpu.core_type = #tpu.core_type<tc>, window_params = [{transform_indices = @transform_0, window_bounds = array<i64: 16, 32>}, {transform_indices = @transform_1, window_bounds = array<i64: 32, 128>}, {pipeline_mode = #tpu.pipeline_mode<synchronous>, transform_indices = @transform_2, window_bounds = array<i64: 32, 128>}, {transform_indices = @transform_3, window_bounds = array<i64: 128, 128>}, {transform_indices = @transform_4, window_bounds = array<i64: 16, 128>}]} {
    %c0 = arith.constant 0 : index
    %c0_0 = arith.constant 0 : index
    %0 = vector.load %arg2[%c0, %c0_0] : memref<16x32xf32, #tpu.memory_space<vmem>>, vector<16x32xf32>
    %c0_i32 = arith.constant 0 : i32
    %1 = arith.cmpi eq, %arg1, %c0_i32 : i32
    %2 = arith.extui %1 : i1 to i32
    %c0_i32_1 = arith.constant 0 : i32
    %3 = arith.cmpi ne, %2, %c0_i32_1 : i32
    scf.if %3 {
      %c0_11 = arith.constant 0 : index
      %c0_12 = arith.constant 0 : index
      %11 = vector.load %arg4[%c0_11, %c0_12] : memref<32x128xf32, #tpu.memory_space<vmem>>, vector<32x128xf32>
      %cst_13 = arith.constant dense<0.000000e+00> : vector<16x128xf32>
      %12 = tpu.matmul %0, %11, %cst_13 {dimension_numbers = #tpu.dot_dimension_numbers<[1], [0], [0], [1], [0, 0, 1, 1], [], []>} : vector<16x32xf32>, vector<32x128xf32>, vector<16x128xf32> -> vector<16x128xf32>
      %c0_14 = arith.constant 0 : index
      %c0_15 = arith.constant 0 : index
      %13 = vector.load %arg7[%c0_14, %c0_15] : memref<16x128xf32, #tpu.memory_space<vmem>>, vector<16x128xf32>
      tpu.vector_store %arg7[%c0_14, %c0_15], %12 {strides = array<i32>} : memref<16x128xf32, #tpu.memory_space<vmem>>, vector<16x128xf32>,
    } else {
    }
    %c0_2 = arith.constant 0 : index
    %c0_3 = arith.constant 0 : index
    %4 = vector.load %arg3[%c0_2, %c0_3] : memref<32x128xf32, #tpu.memory_space<vmem>>, vector<32x128xf32>
    %cst = arith.constant dense<0.000000e+00> : vector<16x128xf32>
    %5 = tpu.matmul %0, %4, %cst {dimension_numbers = #tpu.dot_dimension_numbers<[1], [0], [0], [1], [0, 0, 1, 1], [], []>} : vector<16x32xf32>, vector<32x128xf32>, vector<16x128xf32> -> vector<16x128xf32>
    %c0_4 = arith.constant 0 : index
    %c0_5 = arith.constant 0 : index
    %6 = vector.load %arg7[%c0_4, %c0_5] : memref<16x128xf32, #tpu.memory_space<vmem>>, vector<16x128xf32>
    %c0_6 = arith.constant 0 : index
    %c0_7 = arith.constant 0 : index
    %7 = vector.load %arg5[%c0_6, %c0_7] : memref<128x128xf32, #tpu.memory_space<vmem>>, vector<128x128xf32>
    %cst_8 = arith.constant dense<0.000000e+00> : vector<16x128xf32>
    %8 = tpu.matmul %6, %7, %cst_8 {dimension_numbers = #tpu.dot_dimension_numbers<[1], [0], [0], [1], [0, 0, 1, 1], [], []>} : vector<16x128xf32>, vector<128x128xf32>, vector<16x128xf32> -> vector<16x128xf32>
    %9 = arith.addf %5, %8 : vector<16x128xf32>
    %c0_9 = arith.constant 0 : index
    %c0_10 = arith.constant 0 : index
    %10 = vector.load %arg6[%c0_9, %c0_10] : memref<16x128xf32, #tpu.memory_space<vmem>>, vector<16x128xf32>
    tpu.vector_store %arg6[%c0_9, %c0_10], %9 {strides = array<i32>} : memref<16x128xf32, #tpu.memory_space<vmem>>, vector<16x128xf32>,
    return
  }
  func.func @transform_0(%arg0: i32, %arg1: i32) -> (i32, i32) {
    %c0_i32 = arith.constant 0 : i32
    %c0_i32_0 = arith.constant 0 : i32
    return %arg0, %c0_i32 : i32, i32
  }
  func.func @transform_1(%arg0: i32, %arg1: i32) -> (i32, i32) {
    %c0_i32 = arith.constant 0 : i32
    %c0_i32_0 = arith.constant 0 : i32
    return %c0_i32, %arg1 : i32, i32
  }
  func.func @transform_2(%arg0: i32, %arg1: i32) -> (i32, i32) {
    %c0_i32 = arith.constant 0 : i32
    %c0_i32_0 = arith.constant 0 : i32
    %c0_i32_1 = arith.constant 0 : i32
    return %c0_i32, %c0_i32_0 : i32, i32
  }
  func.func @transform_3(%arg0: i32, %arg1: i32) -> (i32, i32) {
    %c0_i32 = arith.constant 0 : i32
    %c0_i32_0 = arith.constant 0 : i32
    return %c0_i32, %arg1 : i32, i32
  }
  func.func @transform_4(%arg0: i32, %arg1: i32) -> (i32, i32) {
    %c0_i32 = arith.constant 0 : i32
    return %arg0, %arg1 : i32, i32
  }
}

</mosaic_0001>

<llo_original>
// kernel: tpu_custom_call.1
$region0: #{tpu_custom_call.1}
  #allocation0 [shape = 'u32[]', space=smem, size = 0x4, offset = 0x4, fixed_abs, tag = 'smem constant byte address 0x4 - core index']
  #allocation1 [shape = 'u32[72,128]{1,0:T(1,128)}', space=vmem, size = 0x9000, scoped, tag = 'internal scratch']
  #allocation2 [shape = 'f32[16,128]{1,0:T(8,128)}', space=vmem, size = 0x2000, scoped, tag = 'scratch operand']
  %s0 = inlined_call_operand.hbm [shape: f32[16,32], index: 0, kind: input, shape index: {}]
  %s1 = inlined_call_operand.hbm [shape: f32[32,128], index: 1, kind: input, shape index: {}]
  %s2 = inlined_call_operand.hbm [shape: f32[32,128], index: 2, kind: input, shape index: {}]
  %s3 = inlined_call_operand.hbm [shape: f32[128,128], index: 3, kind: input, shape index: {}]
  %s4 = inlined_call_operand.hbm [shape: f32[16,128], index: 4, kind: output, shape index: {}]
  %s5 = sld [smem:[#allocation0]]
  $region46: #{tpu_custom_call.1} parent=0
    _
  %s7 = ssub.s32 1, %s5
  %s8 = scalar_select 0, %s7, %s5
  $region1: #{tpu_custom_call.1} parent=0
    #allocation3 [shape = 'u8[8192]{0}', space=vmem, size = 0x2000, scoped, tag = 'input window, operand 0, single buffered']
    #allocation4 [shape = 's32[1]{0}', space=sflag, size = 0x4, scoped, tag = 'scoped memory for tpu_custom_call.1']
    #allocation5 [shape = 's32[1]{0}', space=sflag, size = 0x4, scoped, tag = 'scoped memory for tpu_custom_call.1']
    #allocation6 [shape = 'u8[16384]{0}', space=vmem, size = 0x4000, scoped, tag = 'input window, operand 1, single buffered']
    #allocation7 [shape = 's32[1]{0}', space=sflag, size = 0x4, scoped, tag = 'scoped memory for tpu_custom_call.1']
    #allocation8 [shape = 'u8[16384]{0}', space=vmem, size = 0x4000, scoped, tag = 'input window, operand 2, single buffered']
    #allocation9 [shape = 'u8[65536]{0}', space=vmem, size = 0x10000, scoped, tag = 'input window, operand 3, single buffered']
    #allocation10 [shape = 's32[1]{0}', space=sflag, size = 0x4, scoped, tag = 'scoped memory for tpu_custom_call.1']
    #allocation11 [shape = 'u8[8192]{0}', space=vmem, size = 0x2000, scoped, tag = 'output window, operand 0, single buffered']
    %9 = vsyncpa [#allocation4], 0
    %10 = vsyncpa [#allocation7], 0
    %11 = vsyncpa [#allocation10], 0
    %12 = vsyncpa [#allocation5], 0
    // Predicated region
    $region2: #{tpu_custom_call.1} parent=1 // pred_check
      _
    $region3: #{tpu_custom_call.1} parent=1 // pred_check_branch
      %14 = sbr.rel (0) target = $region5
    $region4: #{tpu_custom_call.1} parent=1 // pred_region
      %16 = vsyncadd [#allocation4], 0
      %s17 = sshll.u32 %s0, 4
      %s18 = int_to_ptr.hbm [resolvable:$true] %s17
      %s19 = sshll.u32 [#allocation3], 4
      %s20 = int_to_ptr.vmem [resolvable:$true] %s19
      %25 = dma.hbm_to_vmem [thread:$0]  %s18, 256, %s20, [#allocation4], 128, 128, 8
    $region5: #{tpu_custom_call.1} parent=1 // pred_fallthru
      _
    // Predicated region
    $region6: #{tpu_custom_call.1} parent=1 // pred_check
      _
    $region7: #{tpu_custom_call.1} parent=1 // pred_check_branch
      %27 = sbr.rel (0) target = $region9
    $region8: #{tpu_custom_call.1} parent=1 // pred_region
      %29 = vsyncadd [#allocation7], 0
      %s30 = sshll.u32 %s1, 4
      %s31 = int_to_ptr.hbm [resolvable:$true] %s30
      %s32 = sshll.u32 [#allocation6], 4
      %s33 = int_to_ptr.vmem [resolvable:$true] %s32
      %38 = dma.hbm_to_vmem [thread:$0]  %s31, 512, %s33, [#allocation7], 128, 128, 8
    $region9: #{tpu_custom_call.1} parent=1 // pred_fallthru
      _
    // Predicated region
    $region10: #{tpu_custom_call.1} parent=1 // pred_check
      _
    $region11: #{tpu_custom_call.1} parent=1 // pred_check_branch
      %40 = sbr.rel (0) target = $region13
    $region12: #{tpu_custom_call.1} parent=1 // pred_region
      %42 = vsyncadd [#allocation7], 0
      %s43 = sshll.u32 %s2, 4
      %s44 = int_to_ptr.hbm [resolvable:$true] %s43
      %s45 = sshll.u32 [#allocation8], 4
      %s46 = int_to_ptr.vmem [resolvable:$true] %s45
      %51 = dma.hbm_to_vmem [thread:$0]  %s44, 512, %s46, [#allocation7], 128, 128, 8
    $region13: #{tpu_custom_call.1} parent=1 // pred_fallthru
      _
    // Predicated region
    $region14: #{tpu_custom_call.1} parent=1 // pred_check
      _
    $region15: #{tpu_custom_call.1} parent=1 // pred_check_branch
      %53 = sbr.rel (0) target = $region17
    $region16: #{tpu_custom_call.1} parent=1 // pred_region
      %55 = vsyncadd [#allocation10], 0
      %s56 = sshll.u32 %s3, 4
      %s57 = int_to_ptr.hbm [resolvable:$true] %s56
      %s58 = sshll.u32 [#allocation9], 4
      %s59 = int_to_ptr.vmem [resolvable:$true] %s58
      %64 = dma.hbm_to_vmem [thread:$0]  %s57, 2048, %s59, [#allocation10], 128, 128, 8
    $region17: #{tpu_custom_call.1} parent=1 // pred_fallthru
      _
    // Predicated region
    $region18: #{tpu_custom_call.1} parent=1 // pred_check
      _
    $region19: #{tpu_custom_call.1} parent=1 // pred_check_branch
      %66 = sbr.rel (0) target = $region21
    $region20: #{tpu_custom_call.1} parent=1 // pred_region
      %68 = dma.done [#allocation4], 256
    $region21: #{tpu_custom_call.1} parent=1 // pred_fallthru
      _
    // Predicated region
    $region22: #{tpu_custom_call.1} parent=1 // pred_check
      _
    $region23: #{tpu_custom_call.1} parent=1 // pred_check_branch
      %70 = sbr.rel (0) target = $region25
    $region24: #{tpu_custom_call.1} parent=1 // pred_region
      %72 = dma.done [#allocation7], 512
    $region25: #{tpu_custom_call.1} parent=1 // pred_fallthru
      _
    // Predicated region
    $region26: #{tpu_custom_call.1} parent=1 // pred_check
      _
    $region27: #{tpu_custom_call.1} parent=1 // pred_check_branch
      %74 = sbr.rel (0) target = $region29
    $region28: #{tpu_custom_call.1} parent=1 // pred_region
      %76 = dma.done [#allocation7], 512
    $region29: #{tpu_custom_call.1} parent=1 // pred_fallthru
      _
    // Predicated region
    $region30: #{tpu_custom_call.1} parent=1 // pred_check
      _
    $region31: #{tpu_custom_call.1} parent=1 // pred_check_branch
      %78 = sbr.rel (0) target = $region33
    $region32: #{tpu_custom_call.1} parent=1 // pred_region
      %80 = dma.done [#allocation10], 2048
    $region33: #{tpu_custom_call.1} parent=1 // pred_fallthru
      _
    %v81 = vld [vmem:[#allocation3] sm:$0xff]
    %v82 = vld [vmem:[#allocation3 + $0x8] sm:$0xff]
    %p83 = scmp.eq.s32.totalorder 0, 0
    // Predicated region
    $region34: #{tpu_custom_call.1} parent=1 // pred_check
      %p84 = pneg %p83
    $region35: #{tpu_custom_call.1} parent=1 // pred_check_branch
      %86 = sbr.rel (%p84) target = $region37
    $region36: #{tpu_custom_call.1} parent=1 // pred_region
      %v87 = vld [vmem:[#allocation8] sm:$0xff]
      %v88 = vld [vmem:[#allocation8 + $0x8] sm:$0xff]
      %v89 = vld [vmem:[#allocation8 + $0x10] sm:$0xff]
      %v90 = vld [vmem:[#allocation8 + $0x18] sm:$0xff]
      %vm91 = vcmask 261120
      %v93 = vsel %vm91, %v81, 0
      %v96 = vsel %vm91, %v82, 0
      %98 = vmatpush.msra.mxu0 0.0
      %99 = vmatpush.msra.mxu0 0.0
      %100 = vmatpush.msra.mxu0 0.0
      %101 = vmatpush.msra.mxu0 0.0
      %102 = vmatpush.msra.mxu0 0.0
      %103 = vmatpush.msra.mxu0 0.0
      %104 = vmatpush.msra.mxu0 0.0
      %105 = vmatpush.msra.mxu0 0.0
      %106 = vmatpush.msra.mxu0 0.0
      %107 = vmatpush.msra.mxu0 0.0
      %108 = vmatpush.msra.mxu0 0.0
      %109 = vmatpush.msra.mxu0 0.0
      %110 = vmatpush.msra.mxu0 %v90
      %111 = vmatpush.msra.mxu0 %v89
      %112 = vmatpush.msra.mxu0 %v88
      %113 = vmatpush.msra.mxu0 %v87
      %114 = vmatmul.f32.gmra.mxu0 %v93
      %v115 = vpop.f32.mrf.mxu0
      %v116 = vadd.f32 0.0, %v115
      %117 = vmatmul.f32.gmra.mxu0 %v96
      %v118 = vpop.f32.mrf.mxu0
      %v119 = vadd.f32 0.0, %v118
      %120 = vdwg.mxu0
      %121 = vst [vmem:[#allocation2] sm:$0xff] %v116
      %122 = vst [vmem:[#allocation2 + $0x8] sm:$0xff] %v119
    $region37: #{tpu_custom_call.1} parent=1 // pred_fallthru
      _
    %v123 = vld [vmem:[#allocation6] sm:$0xff]
    %v124 = vld [vmem:[#allocation6 + $0x8] sm:$0xff]
    %v125 = vld [vmem:[#allocation6 + $0x10] sm:$0xff]
    %v126 = vld [vmem:[#allocation6 + $0x18] sm:$0xff]
    %v127 = vld [vmem:[#allocation2] sm:$0xff]
    %v128 = vld [vmem:[#allocation2 + $0x8] sm:$0xff]
    %v129 = vld [vmem:[#allocation9] sm:$0xff]
    %v130 = vld [vmem:[#allocation9 + $0x8] sm:$0xff]
    %v131 = vld [vmem:[#allocation9 + $0x10] sm:$0xff]
    %v132 = vld [vmem:[#allocation9 + $0x18] sm:$0xff]
    %v133 = vld [vmem:[#allocation9 + $0x20] sm:$0xff]
    %v134 = vld [vmem:[#allocation9 + $0x28] sm:$0xff]
    %v135 = vld [vmem:[#allocation9 + $0x30] sm:$0xff]
    %v136 = vld [vmem:[#allocation9 + $0x38] sm:$0xff]
    %v137 = vld [vmem:[#allocation9 + $0x40] sm:$0xff]
    %v138 = vld [vmem:[#allocation9 + $0x48] sm:$0xff]
    %v139 = vld [vmem:[#allocation9 + $0x50] sm:$0xff]
    %v140 = vld [vmem:[#allocation9 + $0x58] sm:$0xff]
    %v141 = vld [vmem:[#allocation9 + $0x60] sm:$0xff]
    %v142 = vld [vmem:[#allocation9 + $0x68] sm:$0xff]
    %v143 = vld [vmem:[#allocation9 + $0x70] sm:$0xff]
    %v144 = vld [vmem:[#allocation9 + $0x78] sm:$0xff]
    %145 = vmatpush.msra.mxu0 %v144
    %146 = vmatpush.msra.mxu0 %v143
    %147 = vmatpush.msra.mxu0 %v142
    %148 = vmatpush.msra.mxu0 %v141
    %149 = vmatpush.msra.mxu0 %v140
    %150 = vmatpush.msra.mxu0 %v139
    %151 = vmatpush.msra.mxu0 %v138
    %152 = vmatpush.msra.mxu0 %v137
    %153 = vmatpush.msra.mxu0 %v136
    %154 = vmatpush.msra.mxu0 %v135
    %155 = vmatpush.msra.mxu0 %v134
    %156 = vmatpush.msra.mxu0 %v133
    %157 = vmatpush.msra.mxu0 %v132
    %158 = vmatpush.msra.mxu0 %v131
    %159 = vmatpush.msra.mxu0 %v130
    %160 = vmatpush.msra.mxu0 %v129
    %161 = vmatmul.f32.gmra.mxu0 %v127
    %v162 = vpop.f32.mrf.mxu0
    %v163 = vadd.f32 0.0, %v162
    %164 = vmatmul.f32.gmra.mxu0 %v128
    %v165 = vpop.f32.mrf.mxu0
    %v166 = vadd.f32 0.0, %v165
    %167 = vdwg.mxu0
    %vm168 = vcmask 261120
    %v170 = vsel %vm168, %v81, 0
    %v173 = vsel %vm168, %v82, 0
    %175 = vmatpush.msra.mxu0 0.0
    %176 = vmatpush.msra.mxu0 0.0
    %177 = vmatpush.msra.mxu0 0.0
    %178 = vmatpush.msra.mxu0 0.0
    %179 = vmatpush.msra.mxu0 0.0
    %180 = vmatpush.msra.mxu0 0.0
    %181 = vmatpush.msra.mxu0 0.0
    %182 = vmatpush.msra.mxu0 0.0
    %183 = vmatpush.msra.mxu0 0.0
    %184 = vmatpush.msra.mxu0 0.0
    %185 = vmatpush.msra.mxu0 0.0
    %186 = vmatpush.msra.mxu0 0.0
    %187 = vmatpush.msra.mxu0 %v126
    %188 = vmatpush.msra.mxu0 %v125
    %189 = vmatpush.msra.mxu0 %v124
    %190 = vmatpush.msra.mxu0 %v123
    %191 = vmatmul.f32.gmra.mxu0 %v170
    %v192 = vpop.f32.mrf.mxu0
    %v193 = vadd.f32 %v163, %v192
    %194 = vmatmul.f32.gmra.mxu0 %v173
    %v195 = vpop.f32.mrf.mxu0
    %v196 = vadd.f32 %v166, %v195
    %197 = vdwg.mxu0
    %198 = vst [vmem:[#allocation11] sm:$0xff] %v193
    %199 = vst [vmem:[#allocation11 + $0x8] sm:$0xff] %v196
    // Predicated region
    $region38: #{tpu_custom_call.1} parent=1 // pred_check
      _
    $region39: #{tpu_custom_call.1} parent=1 // pred_check_branch
      %201 = sbr.rel (0) target = $region41
    $region40: #{tpu_custom_call.1} parent=1 // pred_region
      %203 = vsyncadd [#allocation5], 0
      %s204 = sshll.u32 [#allocation11], 4
      %s205 = int_to_ptr.vmem [resolvable:$true] %s204
      %s206 = sshll.u32 %s4, 4
      %s207 = int_to_ptr.hbm [resolvable:$true] %s206
      %212 = dma.vmem_to_hbm [thread:$0]  %s205, 256, %s207, [#allocation5], 128, 128, 8
    $region41: #{tpu_custom_call.1} parent=1 // pred_fallthru
      _
    // Predicated region
    $region42: #{tpu_custom_call.1} parent=1 // pred_check
      _
    $region43: #{tpu_custom_call.1} parent=1 // pred_check_branch
      %214 = sbr.rel (0) target = $region45
    $region44: #{tpu_custom_call.1} parent=1 // pred_region
      %216 = dma.done [#allocation5], 256
    $region45: #{tpu_custom_call.1} parent=1 // pred_fallthru
      _
    %217 = vsyncpa [#allocation4], 1
    %218 = vsyncpa [#allocation7], 1
    %219 = vsyncpa [#allocation10], 1
    %220 = vsyncpa [#allocation5], 1

</llo_original>
